<compile_context>
chip_gen: v7x
topology: tpu7x:2x2x1
jax: 0.10.0
libtpu: 0.0.40
codegen_flags: <defaults>
</compile_context>

<pallas_src>
import functools

import jax
import jax.numpy as jnp
from jax import lax
from jax.experimental import pallas as pl
from jax.experimental.pallas import tpu as pltpu


def affinity_kernel(x_ref, w1_ref, b1_ref, w2_ref, b2_ref, w3_ref, b3_ref,
                    o_ref, *, use_attn: bool, c: int):
    """One affinity problem per grid step.

    x_ref  : [N, C]      flattened input rows (N = num_tra*num_det)
    wK_ref : [in, out]   linear weights (transposed vs. PyTorch storage)
    bK_ref : [1, out]    biases
    o_ref  : [1, N]      lane-dense output row
    """
    x = x_ref[...].astype(jnp.float32)                        # [N, C]
    w1 = w1_ref[...]

    # x @ W1 has no dependency on the softmax -> its MXU work overlaps the
    # EUP exp / XLU reductions below. Bias is deferred until after attention.
    xw1 = jnp.dot(x, w1, preferred_element_type=jnp.float32)  # [N, 16]

    if use_attn:
        # Scale one [N,C] operand once instead of the [N,N] score matrix.
        xs = x * (1.0 / (c ** 0.5))                           # [N, C]
        scores = lax.dot_general(
            xs, x, (((1,), (1,)), ((), ())),
            preferred_element_type=jnp.float32)               # [N, N]
        m = jnp.max(scores, axis=-1, keepdims=True)           # [N, 1]  (XLU)
        p = jnp.exp(scores - m)                               # unnormalized
        rowsum = jnp.sum(p, axis=-1, keepdims=True)           # [N, 1]  (XLU)
        # (softmax(p) @ x) @ W1  ==  (p_unnorm @ (x @ W1)) * (1/rowsum)
        h = jnp.dot(p, xw1, preferred_element_type=jnp.float32)   # [N, 16]
        h = h * pl.reciprocal(rowsum, approx=True)             # EUP slot
    else:
        h = xw1

    # SequentialBlock: Linear -> ReLU -> Linear -> ReLU -> Linear -> ReLU
    h = jnp.maximum(h + b1_ref[...], 0.0)
    h = jnp.maximum(
        jnp.dot(h, w2_ref[...], preferred_element_type=jnp.float32)
        + b2_ref[...], 0.0)
    # Lane-dense last layer: contract w3[16,1] dim 0 with h[N,16] dim 1 -> [1,N]
    out = lax.dot_general(
        w3_ref[...], h, (((0,), (1,)), ((), ())),
        preferred_element_type=jnp.float32)                   # [1, N]
    out = jnp.maximum(out + b3_ref[...], 0.0)                 # final_activation
    o_ref[...] = out.astype(o_ref.dtype)


def affinity_forward_batched(xb, params, use_attn=True):
    """xb: [B, num_tra, num_det, c] -> [B, num_tra, num_det].

    One pallas_call, grid over the batch axis (parallel -> megacore sharding).
    """
    B, num_tra, num_det, c = xb.shape
    n = num_tra * num_det
    x2 = xb.reshape(B, n, c)                                  # glue reshape
    (w1, b1), (w2, b2), (w3, b3) = params

    kernel = functools.partial(affinity_kernel, use_attn=use_attn, c=c)

    def w_spec(shape):
        # Constant block index -> weights stay resident in VMEM across grid.
        return pl.BlockSpec(shape, lambda b: (0,) * len(shape))

    out = pl.pallas_call(
        kernel,
        out_shape=jax.ShapeDtypeStruct((B, 1, n), jnp.float32),
        grid=(B,),
        in_specs=[
            pl.BlockSpec((None, n, c), lambda b: (b, 0, 0)),  # x (batch-sliced)
            w_spec(w1.shape), w_spec(b1.shape),
            w_spec(w2.shape), w_spec(b2.shape),
            w_spec(w3.shape), w_spec(b3.shape),
        ],
        out_specs=pl.BlockSpec((None, 1, n), lambda b: (b, 0, 0)),
        compiler_params=pltpu.CompilerParams(
            dimension_semantics=("parallel",)),
    )(x2, w1, b1, w2, b2, w3, b3)

    return out.reshape(B, num_tra, num_det)


def affinity_forward(x, params, use_attn=True):
    """x: [num_tra, num_det, c] -> [num_tra, num_det] (single problem)."""
    return affinity_forward_batched(x[None], params, use_attn)[0]


def affinity_reference(x, params, use_attn=True):
    """Pure-JAX reference matching the PyTorch forward exactly."""
    num_tra, num_det, c = x.shape
    xf = x.reshape(num_tra * num_det, c)
    if use_attn:
        scores = (xf @ xf.T) / (c ** 0.5)
        p = jax.nn.softmax(scores, axis=-1)
        xf = p @ xf
    (w1, b1), (w2, b2), (w3, b3) = params
    h = jnp.maximum(xf @ w1 + b1, 0.0)
    h = jnp.maximum(h @ w2 + b2, 0.0)
    h = jnp.maximum(h @ w3 + b3, 0.0)
    return h.reshape(num_tra, num_det)


def init_params(key, dims_list):
    """Deterministic init matching SequentialBlock._initialize_weights for
    'linear' + 'relu': kaiming_normal_ (fan_in, a=0) weights, bias = -0.5."""
    params = []
    in_dim = dims_list[0]
    for out_dim in dims_list[1:]:
        key, kw = jax.random.split(key)
        std = (2.0 / in_dim) ** 0.5
        w = jax.random.normal(kw, (in_dim, out_dim), jnp.float32) * std
        b = jnp.full((1, out_dim), -0.5, jnp.float32)
        params.append((w, b))
        in_dim = out_dim
    return params


if __name__ == "__main__":
    key = jax.random.PRNGKey(0)
    kx, kb, kp = jax.random.split(key, 3)

    # x : [num_node_tra, num_node_det, 3]  (N = 8*16 = 128 -> lane-dense)
    num_tra, num_det, c = 8, 16, 3
    x = jax.random.normal(kx, (num_tra, num_det, c), jnp.float32)

    # affinity_encode_model_dict equivalent:
    #   use_attn=True, dims_list=[3,16,16,1], layer_type='linear',
    #   layer_bias=True, norm_type='none', activate_func='relu', lrelu_slope=0.
    params = init_params(kp, [c, 16, 16, 1])

    out = affinity_forward(x, params, use_attn=True)
    jax.block_until_ready(out)
    assert out.shape == (num_tra, num_det)

    # Correctness vs. pure-JAX reference (tolerance covers approx reciprocal).
    ref = affinity_reference(x, params, use_attn=True)
    assert jnp.allclose(out, ref, rtol=5e-2, atol=5e-2), float(
        jnp.max(jnp.abs(out - ref)))

    # Batched path: 4 independent problems in one call (parallel grid axis).
    xb = jax.random.normal(kb, (4, num_tra, num_det, c), jnp.float32)
    outb = affinity_forward_batched(xb, params, use_attn=True)
    jax.block_until_ready(outb)
    assert outb.shape == (4, num_tra, num_det)
    refb = jnp.stack([affinity_reference(xb[i], params, use_attn=True)
                      for i in range(xb.shape[0])])
    assert jnp.allclose(outb, refb, rtol=5e-2, atol=5e-2)

    print("KERNEL_OK")
</pallas_src>

<mosaic_0001>
module attributes {stable_mosaic.version = 11 : i64} {
  func.func @affinity_kernel(%arg0: i32, %arg1: memref<1x128x3xf32, #tpu.memory_space<vmem>>, %arg2: memref<3x16xf32, #tpu.memory_space<vmem>>, %arg3: memref<1x16xf32, #tpu.memory_space<vmem>>, %arg4: memref<16x16xf32, #tpu.memory_space<vmem>>, %arg5: memref<1x16xf32, #tpu.memory_space<vmem>>, %arg6: memref<16x1xf32, #tpu.memory_space<vmem>>, %arg7: memref<1x1xf32, #tpu.memory_space<vmem>>, %arg8: memref<1x1x128xf32, #tpu.memory_space<vmem>>) attributes {dimension_semantics = [#tpu.dimension_semantics<parallel>], iteration_bounds = array<i64: 1>, scalar_prefetch = 0 : i64, scratch_operands = 0 : i64, tpu.core_type = #tpu.core_type<tc>, window_params = [{transform_indices = @transform_0, window_bounds = array<i64: 1, 128, 3>}, {pipeline_mode = #tpu.pipeline_mode<synchronous>, transform_indices = @transform_1, window_bounds = array<i64: 3, 16>}, {pipeline_mode = #tpu.pipeline_mode<synchronous>, transform_indices = @transform_2, window_bounds = array<i64: 1, 16>}, {pipeline_mode = #tpu.pipeline_mode<synchronous>, transform_indices = @transform_3, window_bounds = array<i64: 16, 16>}, {pipeline_mode = #tpu.pipeline_mode<synchronous>, transform_indices = @transform_4, window_bounds = array<i64: 1, 16>}, {pipeline_mode = #tpu.pipeline_mode<synchronous>, transform_indices = @transform_5, window_bounds = array<i64: 16, 1>}, {pipeline_mode = #tpu.pipeline_mode<synchronous>, transform_indices = @transform_6, window_bounds = array<i64: 1, 1>}, {transform_indices = @transform_7, window_bounds = array<i64: 1, 1, 128>}]} {
    %c0 = arith.constant 0 : index
    %c0_0 = arith.constant 0 : index
    %c0_1 = arith.constant 0 : index
    %0 = vector.load %arg1[%c0, %c0_0, %c0_1] : memref<1x128x3xf32, #tpu.memory_space<vmem>>, vector<1x128x3xf32>
    %1 = vector.shape_cast %0 : vector<1x128x3xf32> to vector<128x3xf32>
    %c0_2 = arith.constant 0 : index
    %c0_3 = arith.constant 0 : index
    %2 = vector.load %arg2[%c0_2, %c0_3] : memref<3x16xf32, #tpu.memory_space<vmem>>, vector<3x16xf32>
    %cst = arith.constant dense<0.000000e+00> : vector<128x16xf32>
    %3 = tpu.matmul %1, %2, %cst {dimension_numbers = #tpu.dot_dimension_numbers<[1], [0], [0], [1], [0, 0, 1, 1], [], []>} : vector<128x3xf32>, vector<3x16xf32>, vector<128x16xf32> -> vector<128x16xf32>
    %cst_4 = arith.constant 0.577350259 : f32
    %4 = vector.broadcast %cst_4 : f32 to vector<128x3xf32>
    %5 = arith.mulf %1, %4 : vector<128x3xf32>
    %cst_5 = arith.constant dense<0.000000e+00> : vector<128x128xf32>
    %6 = tpu.matmul %5, %1, %cst_5 {dimension_numbers = #tpu.dot_dimension_numbers<[1], [1], [0], [0], [0, 0, 1, 0], [], []>} : vector<128x3xf32>, vector<128x3xf32>, vector<128x128xf32> -> vector<128x128xf32>
    %cst_6 = arith.constant dense<0xFF800000> : vector<128xf32>
    %7 = vector.multi_reduction <maximumf>, %6, %cst_6 [1] : vector<128x128xf32> to vector<128xf32>
    %8 = vector.shape_cast %7 : vector<128xf32> to vector<128x1xf32>
    %9 = vector.broadcast %8 : vector<128x1xf32> to vector<128x128xf32>
    %10 = arith.subf %6, %9 : vector<128x128xf32>
    %11 = math.exp %10 : vector<128x128xf32>
    %cst_7 = arith.constant dense<0.000000e+00> : vector<128xf32>
    %12 = vector.multi_reduction <add>, %11, %cst_7 [1] : vector<128x128xf32> to vector<128xf32>
    %13 = vector.shape_cast %12 : vector<128xf32> to vector<128x1xf32>
    %cst_8 = arith.constant dense<0.000000e+00> : vector<128x16xf32>
    %14 = tpu.matmul %11, %3, %cst_8 {dimension_numbers = #tpu.dot_dimension_numbers<[1], [0], [0], [1], [0, 0, 1, 1], [], []>} : vector<128x128xf32>, vector<128x16xf32>, vector<128x16xf32> -> vector<128x16xf32>
    %15 = tpu.reciprocal %13 {approx = true} : vector<128x1xf32> -> vector<128x1xf32>
    %16 = vector.broadcast %15 : vector<128x1xf32> to vector<128x16xf32>
    %17 = arith.mulf %14, %16 : vector<128x16xf32>
    %c0_9 = arith.constant 0 : index
    %c0_10 = arith.constant 0 : index
    %18 = vector.load %arg3[%c0_9, %c0_10] : memref<1x16xf32, #tpu.memory_space<vmem>>, vector<1x16xf32>
    %19 = vector.broadcast %18 : vector<1x16xf32> to vector<128x16xf32>
    %20 = arith.addf %17, %19 : vector<128x16xf32>
    %cst_11 = arith.constant 0.000000e+00 : f32
    %21 = vector.broadcast %cst_11 : f32 to vector<128x16xf32>
    %22 = arith.maximumf %20, %21 : vector<128x16xf32>
    %c0_12 = arith.constant 0 : index
    %c0_13 = arith.constant 0 : index
    %23 = vector.load %arg4[%c0_12, %c0_13] : memref<16x16xf32, #tpu.memory_space<vmem>>, vector<16x16xf32>
    %cst_14 = arith.constant dense<0.000000e+00> : vector<128x16xf32>
    %24 = tpu.matmul %22, %23, %cst_14 {dimension_numbers = #tpu.dot_dimension_numbers<[1], [0], [0], [1], [0, 0, 1, 1], [], []>} : vector<128x16xf32>, vector<16x16xf32>, vector<128x16xf32> -> vector<128x16xf32>
    %c0_15 = arith.constant 0 : index
    %c0_16 = arith.constant 0 : index
    %25 = vector.load %arg5[%c0_15, %c0_16] : memref<1x16xf32, #tpu.memory_space<vmem>>, vector<1x16xf32>
    %26 = vector.broadcast %25 : vector<1x16xf32> to vector<128x16xf32>
    %27 = arith.addf %24, %26 : vector<128x16xf32>
    %cst_17 = arith.constant 0.000000e+00 : f32
    %28 = vector.broadcast %cst_17 : f32 to vector<128x16xf32>
    %29 = arith.maximumf %27, %28 : vector<128x16xf32>
    %c0_18 = arith.constant 0 : index
    %c0_19 = arith.constant 0 : index
    %30 = vector.load %arg6[%c0_18, %c0_19] : memref<16x1xf32, #tpu.memory_space<vmem>>, vector<16x1xf32>
    %cst_20 = arith.constant dense<0.000000e+00> : vector<1x128xf32>
    %31 = tpu.matmul %30, %29, %cst_20 {dimension_numbers = #tpu.dot_dimension_numbers<[0], [1], [1], [0], [0, 1, 1, 0], [], []>} : vector<16x1xf32>, vector<128x16xf32>, vector<1x128xf32> -> vector<1x128xf32>
    %c0_21 = arith.constant 0 : index
    %c0_22 = arith.constant 0 : index
    %32 = vector.load %arg7[%c0_21, %c0_22] : memref<1x1xf32, #tpu.memory_space<vmem>>, vector<1x1xf32>
    %33 = vector.broadcast %32 : vector<1x1xf32> to vector<1x128xf32>
    %34 = arith.addf %31, %33 : vector<1x128xf32>
    %cst_23 = arith.constant 0.000000e+00 : f32
    %35 = vector.broadcast %cst_23 : f32 to vector<1x128xf32>
    %36 = arith.maximumf %34, %35 : vector<1x128xf32>
    %c0_24 = arith.constant 0 : index
    %c0_25 = arith.constant 0 : index
    %c0_26 = arith.constant 0 : index
    %37 = vector.load %arg8[%c0_24, %c0_25, %c0_26] : memref<1x1x128xf32, #tpu.memory_space<vmem>>, vector<1x1x128xf32>
    %38 = vector.shape_cast %37 : vector<1x1x128xf32> to vector<1x128xf32>
    %39 = vector.shape_cast %36 : vector<1x128xf32> to vector<1x1x128xf32>
    tpu.vector_store %arg8[%c0_24, %c0_25, %c0_26], %39 {strides = array<i32>} : memref<1x1x128xf32, #tpu.memory_space<vmem>>, vector<1x1x128xf32>,
    return
  }
  func.func @transform_0(%arg0: i32) -> (i32, i32, i32) {
    %c0_i32 = arith.constant 0 : i32
    %c0_i32_0 = arith.constant 0 : i32
    %c0_i32_1 = arith.constant 0 : i32
    return %arg0, %c0_i32, %c0_i32_0 : i32, i32, i32
  }
  func.func @transform_1(%arg0: i32) -> (i32, i32) {
    %c0_i32 = arith.constant 0 : i32
    %c0_i32_0 = arith.constant 0 : i32
    %c0_i32_1 = arith.constant 0 : i32
    return %c0_i32, %c0_i32_0 : i32, i32
  }
  func.func @transform_2(%arg0: i32) -> (i32, i32) {
    %c0_i32 = arith.constant 0 : i32
    %c0_i32_0 = arith.constant 0 : i32
    %c0_i32_1 = arith.constant 0 : i32
    return %c0_i32, %c0_i32_0 : i32, i32
  }
  func.func @transform_3(%arg0: i32) -> (i32, i32) {
    %c0_i32 = arith.constant 0 : i32
    %c0_i32_0 = arith.constant 0 : i32
    %c0_i32_1 = arith.constant 0 : i32
    return %c0_i32, %c0_i32_0 : i32, i32
  }
  func.func @transform_4(%arg0: i32) -> (i32, i32) {
    %c0_i32 = arith.constant 0 : i32
    %c0_i32_0 = arith.constant 0 : i32
    %c0_i32_1 = arith.constant 0 : i32
    return %c0_i32, %c0_i32_0 : i32, i32
  }
  func.func @transform_5(%arg0: i32) -> (i32, i32) {
    %c0_i32 = arith.constant 0 : i32
    %c0_i32_0 = arith.constant 0 : i32
    %c0_i32_1 = arith.constant 0 : i32
    return %c0_i32, %c0_i32_0 : i32, i32
  }
  func.func @transform_6(%arg0: i32) -> (i32, i32) {
    %c0_i32 = arith.constant 0 : i32
    %c0_i32_0 = arith.constant 0 : i32
    %c0_i32_1 = arith.constant 0 : i32
    return %c0_i32, %c0_i32_0 : i32, i32
  }
  func.func @transform_7(%arg0: i32) -> (i32, i32, i32) {
    %c0_i32 = arith.constant 0 : i32
    %c0_i32_0 = arith.constant 0 : i32
    %c0_i32_1 = arith.constant 0 : i32
    return %arg0, %c0_i32, %c0_i32_0 : i32, i32, i32
  }
}

</mosaic_0001>

<llo_original>
// kernel: tpu_custom_call.1
$region0: #{tpu_custom_call.1}
  #allocation0 [shape = 'u32[]', space=smem, size = 0x4, offset = 0x4, fixed_abs, tag = 'smem constant byte address 0x4 - core index']
  #allocation1 [shape = 'u32[144,128]{1,0:T(1,128)}', space=vmem, size = 0x12000, scoped, tag = 'internal scratch']
  #allocation2 [shape = 'f32[1,1]{1,0:T(1,128)S(1)}', space=vmem, size = 0x200, scoped, tag = 'scoped memory for tpu_custom_call.1']
  %s0 = inlined_call_operand.vmem [shape: f32[1,128,3], index: 0, kind: input, shape index: {}]
  %s1 = inlined_call_operand.vmem [shape: f32[3,16], index: 1, kind: input, shape index: {}]
  %s2 = inlined_call_operand.vmem [shape: f32[1,16], index: 2, kind: input, shape index: {}]
  %s3 = inlined_call_operand.vmem [shape: f32[16,16], index: 3, kind: input, shape index: {}]
  %s4 = inlined_call_operand.vmem [shape: f32[1,16], index: 4, kind: input, shape index: {}]
  %s5 = inlined_call_operand.vmem [shape: f32[16,1], index: 5, kind: input, shape index: {}]
  %s6 = inlined_call_operand.<no memory space> [shape: f32[1,1], index: 6, kind: input, shape index: {}]
  %s7 = inlined_call_operand.hbm [shape: f32[1,1,128], index: 7, kind: output, shape index: {}]
  %s8 = sld [smem:[#allocation0]]
  $region38: #{tpu_custom_call.1} parent=0
    _
  %s10 = ssub.s32 1, %s8
  %s11 = scalar_select 0, %s10, %s8
  %v12 = vstv %s6
  %13 = vst [vmem:[#allocation2] sm:$0x1] %v12
  $region1: #{tpu_custom_call.1} parent=0
    #allocation3 [shape = 'u8[512]{0}', space=vmem, size = 0x400, scoped, tag = 'output window, operand 0, single buffered']
    #allocation4 [shape = 's32[1]{0}', space=sflag, size = 0x4, scoped, tag = 'scoped memory for tpu_custom_call.1']
    %14 = vsyncpa [#allocation4], 0
    // Predicated region
    $region2: #{tpu_custom_call.1} parent=1 // pred_check
      _
    $region3: #{tpu_custom_call.1} parent=1 // pred_check_branch
      %16 = sbr.rel (0) target = $region5
    $region4: #{tpu_custom_call.1} parent=1 // pred_region
      _
    $region5: #{tpu_custom_call.1} parent=1 // pred_fallthru
      _
    // Predicated region
    $region6: #{tpu_custom_call.1} parent=1 // pred_check
      _
    $region7: #{tpu_custom_call.1} parent=1 // pred_check_branch
      %18 = sbr.rel (0) target = $region9
    $region8: #{tpu_custom_call.1} parent=1 // pred_region
      _
    $region9: #{tpu_custom_call.1} parent=1 // pred_fallthru
      _
    // Predicated region
    $region10: #{tpu_custom_call.1} parent=1 // pred_check
      _
    $region11: #{tpu_custom_call.1} parent=1 // pred_check_branch
      %20 = sbr.rel (0) target = $region13
    $region12: #{tpu_custom_call.1} parent=1 // pred_region
      _
    $region13: #{tpu_custom_call.1} parent=1 // pred_fallthru
      _
    // Predicated region
    $region14: #{tpu_custom_call.1} parent=1 // pred_check
      _
    $region15: #{tpu_custom_call.1} parent=1 // pred_check_branch
      %22 = sbr.rel (0) target = $region17
    $region16: #{tpu_custom_call.1} parent=1 // pred_region
      _
    $region17: #{tpu_custom_call.1} parent=1 // pred_fallthru
      _
    // Predicated region
    $region18: #{tpu_custom_call.1} parent=1 // pred_check
      _
    $region19: #{tpu_custom_call.1} parent=1 // pred_check_branch
      %24 = sbr.rel (0) target = $region21
    $region20: #{tpu_custom_call.1} parent=1 // pred_region
      _
    $region21: #{tpu_custom_call.1} parent=1 // pred_fallthru
      _
    // Predicated region
    $region22: #{tpu_custom_call.1} parent=1 // pred_check
      _
    $region23: #{tpu_custom_call.1} parent=1 // pred_check_branch
      %26 = sbr.rel (0) target = $region25
    $region24: #{tpu_custom_call.1} parent=1 // pred_region
      _
    $region25: #{tpu_custom_call.1} parent=1 // pred_fallthru
      _
    // Predicated region
    $region26: #{tpu_custom_call.1} parent=1 // pred_check
      _
    $region27: #{tpu_custom_call.1} parent=1 // pred_check_branch
      %28 = sbr.rel (0) target = $region29
    $region28: #{tpu_custom_call.1} parent=1 // pred_region
      _
    $region29: #{tpu_custom_call.1} parent=1 // pred_fallthru
      _
    %v29 = vld [vmem:[%s0] sm:$0xff]
    %v30 = vld [vmem:[%s0 + $0x8] sm:$0xff]
    %v31 = vld [vmem:[%s0 + $0x10] sm:$0xff]
    %v32 = vld [vmem:[%s0 + $0x18] sm:$0xff]
    %v33 = vld [vmem:[%s0 + $0x20] sm:$0xff]
    %v34 = vld [vmem:[%s0 + $0x28] sm:$0xff]
    %v35 = vld [vmem:[%s0 + $0x30] sm:$0xff]
    %v36 = vld [vmem:[%s0 + $0x38] sm:$0xff]
    %v37 = vld [vmem:[%s0 + $0x40] sm:$0xff]
    %v38 = vld [vmem:[%s0 + $0x48] sm:$0xff]
    %v39 = vld [vmem:[%s0 + $0x50] sm:$0xff]
    %v40 = vld [vmem:[%s0 + $0x58] sm:$0xff]
    %v41 = vld [vmem:[%s0 + $0x60] sm:$0xff]
    %v42 = vld [vmem:[%s0 + $0x68] sm:$0xff]
    %v43 = vld [vmem:[%s0 + $0x70] sm:$0xff]
    %v44 = vld [vmem:[%s0 + $0x78] sm:$0xff]
    %v45 = vld [vmem:[%s1] sm:$0x7]
    %vm46 = vcmask 23552
    %v48 = vsel %vm46, %v29, 0
    %v51 = vsel %vm46, %v30, 0
    %v54 = vsel %vm46, %v31, 0
    %v57 = vsel %vm46, %v32, 0
    %v60 = vsel %vm46, %v33, 0
    %v63 = vsel %vm46, %v34, 0
    %v66 = vsel %vm46, %v35, 0
    %v69 = vsel %vm46, %v36, 0
    %v72 = vsel %vm46, %v37, 0
    %v75 = vsel %vm46, %v38, 0
    %v78 = vsel %vm46, %v39, 0
    %v81 = vsel %vm46, %v40, 0
    %v84 = vsel %vm46, %v41, 0
    %v87 = vsel %vm46, %v42, 0
    %v90 = vsel %vm46, %v43, 0
    %v93 = vsel %vm46, %v44, 0
    %vm95 = vcmask 1042432
    %v97 = vsel %vm95, %v45, 0
    %99 = vmatprep.subr.mxu0 0.0
    %100 = vmatpush1.msra.mxu0 %v97
    %101 = vmatprep.subr.mxu0 0.0
    %102 = vmatpush1.msra.mxu0 0.0
    %103 = vmatprep.subr.mxu0 0.0
    %104 = vmatpush1.msra.mxu0 0.0
    %105 = vmatprep.subr.mxu0 0.0
    %106 = vmatpush1.msra.mxu0 0.0
    %107 = vmatprep.subr.mxu0 0.0
    %108 = vmatpush1.msra.mxu0 0.0
    %109 = vmatprep.subr.mxu0 0.0
    %110 = vmatpush1.msra.mxu0 0.0
    %111 = vmatprep.subr.mxu0 0.0
    %112 = vmatpush1.msra.mxu0 0.0
    %113 = vmatprep.subr.mxu0 0.0
    %114 = vmatpush1.msra.mxu0 0.0
    %115 = vmatprep.subr.mxu0 0.0
    %116 = vmatpush1.msra.mxu0 0.0
    %117 = vmatprep.subr.mxu0 0.0
    %118 = vmatpush1.msra.mxu0 0.0
    %119 = vmatprep.subr.mxu0 0.0
    %120 = vmatpush1.msra.mxu0 0.0
    %121 = vmatprep.subr.mxu0 0.0
    %122 = vmatpush1.msra.mxu0 0.0
    %123 = vmatprep.subr.mxu0 0.0
    %124 = vmatpush1.msra.mxu0 0.0
    %125 = vmatprep.subr.mxu0 0.0
    %126 = vmatpush1.msra.mxu0 0.0
    %127 = vmatprep.subr.mxu0 0.0
    %128 = vmatpush1.msra.mxu0 0.0
    %129 = vmatprep.subr.mxu0 0.0
    %130 = vmatpush1.msra.mxu0 0.0
    %131 = vmatprep.subr.mxu0 0.0
    %132 = vmatpush1.msra.mxu0 0.0
    %133 = vmatprep.subr.mxu0 0.0
    %134 = vmatpush1.msra.mxu0 0.0
    %135 = vmatprep.subr.mxu0 0.0
    %136 = vmatpush1.msra.mxu0 0.0
    %137 = vmatprep.subr.mxu0 0.0
    %138 = vmatpush1.msra.mxu0 0.0
    %139 = vmatprep.subr.mxu0 0.0
    %140 = vmatpush1.msra.mxu0 0.0
    %141 = vmatprep.subr.mxu0 0.0
    %142 = vmatpush1.msra.mxu0 0.0
    %143 = vmatprep.subr.mxu0 0.0
    %144 = vmatpush1.msra.mxu0 0.0
    %145 = vmatprep.subr.mxu0 0.0
    %146 = vmatpush1.msra.mxu0 0.0
    %147 = vmatprep.subr.mxu0 0.0
    %148 = vmatpush1.msra.mxu0 0.0
    %149 = vmatprep.subr.mxu0 0.0
    %150 = vmatpush1.msra.mxu0 0.0
    %151 = vmatprep.subr.mxu0 0.0
    %152 = vmatpush1.msra.mxu0 0.0
    %153 = vmatprep.subr.mxu0 0.0
    %154 = vmatpush1.msra.mxu0 0.0
    %155 = vmatprep.subr.mxu0 0.0
    %156 = vmatpush1.msra.mxu0 0.0
    %157 = vmatprep.subr.mxu0 0.0
    %158 = vmatpush1.msra.mxu0 0.0
    %159 = vmatprep.subr.mxu0 0.0
    %160 = vmatpush1.msra.mxu0 0.0
    %161 = vmatprep.subr.mxu0 0.0
    %162 = vmatpush1.msra.mxu0 0.0
    %163 = vmatprep.mubr.f32.mxu0 0.0
    %164 = vmatmul.mubr.f32.gmra.mrb[0].mxu0 %v48
    %v165 = vpop.f32.mrb[0].mxu0
    %v166 = vadd.f32 0.0, %v165
    %v167 = vpop.f32.mrb[0].mxu0
    %168 = vmatprep.mubr.f32.mxu0 0.0
    %169 = vmatmul.mubr.f32.gmra.mrb[0].mxu0 %v51
    %v170 = vpop.f32.mrb[0].mxu0
    %v171 = vadd.f32 0.0, %v170
    %v172 = vpop.f32.mrb[0].mxu0
    %173 = vmatprep.mubr.f32.mxu0 0.0
    %174 = vmatmul.mubr.f32.gmra.mrb[0].mxu0 %v54
    %v175 = vpop.f32.mrb[0].mxu0
    %v176 = vadd.f32 0.0, %v175
    %v177 = vpop.f32.mrb[0].mxu0
    %178 = vmatprep.mubr.f32.mxu0 0.0
    %179 = vmatmul.mubr.f32.gmra.mrb[0].mxu0 %v57
    %v180 = vpop.f32.mrb[0].mxu0
    %v181 = vadd.f32 0.0, %v180
    %v182 = vpop.f32.mrb[0].mxu0
    %183 = vmatprep.mubr.f32.mxu0 0.0
    %184 = vmatmul.mubr.f32.gmra.mrb[0].mxu0 %v60
    %v185 = vpop.f32.mrb[0].mxu0
    %v186 = vadd.f32 0.0, %v185
    %v187 = vpop.f32.mrb[0].mxu0
    %188 = vmatprep.mubr.f32.mxu0 0.0
    %189 = vmatmul.mubr.f32.gmra.mrb[0].mxu0 %v63
    %v190 = vpop.f32.mrb[0].mxu0
    %v191 = vadd.f32 0.0, %v190
    %v192 = vpop.f32.mrb[0].mxu0
    %193 = vmatprep.mubr.f32.mxu0 0.0
    %194 = vmatmul.mubr.f32.gmra.mrb[0].mxu0 %v66
    %v195 = vpop.f32.mrb[0].mxu0
    %v196 = vadd.f32 0.0, %v195
    %v197 = vpop.f32.mrb[0].mxu0
    %198 = vmatprep.mubr.f32.mxu0 0.0
    %199 = vmatmul.mubr.f32.gmra.mrb[0].mxu0 %v69
    %v200 = vpop.f32.mrb[0].mxu0
    %v201 = vadd.f32 0.0, %v200
    %v202 = vpop.f32.mrb[0].mxu0
    %203 = vmatprep.mubr.f32.mxu0 0.0
    %204 = vmatmul.mubr.f32.gmra.mrb[0].mxu0 %v72
    %v205 = vpop.f32.mrb[0].mxu0
    %v206 = vadd.f32 0.0, %v205
    %v207 = vpop.f32.mrb[0].mxu0
    %208 = vmatprep.mubr.f32.mxu0 0.0
    %209 = vmatmul.mubr.f32.gmra.mrb[0].mxu0 %v75
    %v210 = vpop.f32.mrb[0].mxu0
    %v211 = vadd.f32 0.0, %v210
    %v212 = vpop.f32.mrb[0].mxu0
    %213 = vmatprep.mubr.f32.mxu0 0.0
    %214 = vmatmul.mubr.f32.gmra.mrb[0].mxu0 %v78
    %v215 = vpop.f32.mrb[0].mxu0
    %v216 = vadd.f32 0.0, %v215
    %v217 = vpop.f32.mrb[0].mxu0
    %218 = vmatprep.mubr.f32.mxu0 0.0
    %219 = vmatmul.mubr.f32.gmra.mrb[0].mxu0 %v81
    %v220 = vpop.f32.mrb[0].mxu0
    %v221 = vadd.f32 0.0, %v220
    %v222 = vpop.f32.mrb[0].mxu0
    %223 = vmatprep.mubr.f32.mxu0 0.0
    %224 = vmatmul.mubr.f32.gmra.mrb[0].mxu0 %v84
    %v225 = vpop.f32.mrb[0].mxu0
    %v226 = vadd.f32 0.0, %v225
    %v227 = vpop.f32.mrb[0].mxu0
    %228 = vmatprep.mubr.f32.mxu0 0.0
    %229 = vmatmul.mubr.f32.gmra.mrb[0].mxu0 %v87
    %v230 = vpop.f32.mrb[0].mxu0
    %v231 = vadd.f32 0.0, %v230
    %v232 = vpop.f32.mrb[0].mxu0
    %233 = vmatprep.mubr.f32.mxu0 0.0
    %234 = vmatmul.mubr.f32.gmra.mrb[0].mxu0 %v90
    %v235 = vpop.f32.mrb[0].mxu0
    %v236 = vadd.f32 0.0, %v235
    %v237 = vpop.f32.mrb[0].mxu0
    %238 = vmatprep.mubr.f32.mxu0 0.0
    %239 = vmatmul.mubr.f32.gmra.mrb[0].mxu0 %v93
    %v240 = vpop.f32.mrb[0].mxu0
    %v241 = vadd.f32 0.0, %v240
    %v242 = vpop.f32.mrb[0].mxu0
    %243 = vdwg.mxu0
    %v244 = vmul.f32 %v29, 0.57735026
    %v245 = vmul.f32 %v30, 0.57735026
    %v246 = vmul.f32 %v31, 0.57735026
    %v247 = vmul.f32 %v32, 0.57735026
    %v248 = vmul.f32 %v33, 0.57735026
    %v249 = vmul.f32 %v34, 0.57735026
    %v250 = vmul.f32 %v35, 0.57735026
    %v251 = vmul.f32 %v36, 0.57735026
    %v252 = vmul.f32 %v37, 0.57735026
    %v253 = vmul.f32 %v38, 0.57735026
    %v254 = vmul.f32 %v39, 0.57735026
    %v255 = vmul.f32 %v40, 0.57735026
    %v256 = vmul.f32 %v41, 0.57735026
    %v257 = vmul.f32 %v42, 0.57735026
    %v258 = vmul.f32 %v43, 0.57735026
    %v259 = vmul.f32 %v44, 0.57735026
    %v261 = vsel %vm46, %v244, 0
    %v264 = vsel %vm46, %v245, 0
    %v267 = vsel %vm46, %v246, 0
    %v270 = vsel %vm46, %v247, 0
    %v273 = vsel %vm46, %v248, 0
    %v276 = vsel %vm46, %v249, 0
    %v279 = vsel %vm46, %v250, 0
    %v282 = vsel %vm46, %v251, 0
    %v285 = vsel %vm46, %v252, 0
    %v288 = vsel %vm46, %v253, 0
    %v291 = vsel %vm46, %v254, 0
    %v294 = vsel %vm46, %v255, 0
    %v297 = vsel %vm46, %v256, 0
    %v300 = vsel %vm46, %v257, 0
    %v303 = vsel %vm46, %v258, 0
    %v306 = vsel %vm46, %v259, 0
    %308 = vmatprep.subr.mxu0 0.0
    %309 = vmatpush1.xpose.msra.mxu0 %v48
    %310 = vmatprep.subr.mxu0 0.0
    %311 = vmatpush1.xpose.msra.mxu0 %v51
    %312 = vmatprep.subr.mxu0 0.0
    %313 = vmatpush1.xpose.msra.mxu0 %v54
    %314 = vmatprep.subr.mxu0 0.0
    %315 = vmatpush1.xpose.msra.mxu0 %v57
    %316 = vmatprep.subr.mxu0 0.0
    %317 = vmatpush1.xpose.msra.mxu0 %v60
    %318 = vmatprep.subr.mxu0 0.0
    %319 = vmatpush1.xpose.msra.mxu0 %v63
    %320 = vmatprep.subr.mxu0 0.0
    %321 = vmatpush1.xpose.msra.mxu0 %v66
    %322 = vmatprep.subr.mxu0 0.0
    %323 = vmatpush1.xpose.msra.mxu0 %v69
    %324 = vmatprep.subr.mxu0 0.0
    %325 = vmatpush1.xpose.msra.mxu0 %v72
    %326 = vmatprep.subr.mxu0 0.0
    %327 = vmatpush1.xpose.msra.mxu0 %v75
    %328 = vmatprep.subr.mxu0 0.0
    %329 = vmatpush1.xpose.msra.mxu0 %v78
    %330 = vmatprep.subr.mxu0 0.0
    %331 = vmatpush1.xpose.msra.mxu0 %v81
    %332 = vmatprep.subr.mxu0 0.0
    %333 = vmatpush1.xpose.msra.mxu0 %v84
    %334 = vmatprep.subr.mxu0 0.0
    %335 = vmatpush1.xpose.msra.mxu0 %v87
    %336 = vmatprep.subr.mxu0 0.0
    %337 = vmatpush1.xpose.msra.mxu0 %v90
    %338 = vmatprep.subr.mxu0 0.0
    %339 = vmatpush1.xpose.msra.mxu0 %v93
    %340 = vmatprep.subr.mxu0 0.0
    %341 = vmatpush1.xpose.msra.mxu0 0.0
    %342 = vmatprep.subr.mxu0 0.0
    %343 = vmatpush1.xpose.msra.mxu0 0.0
    %344 = vmatprep.subr.mxu0 0.0
    %345 = vmatpush1.xpose.msra.mxu0 0.0
    %346 = vmatprep.subr.mxu0 0.0
    %347 = vmatpush1.xpose.msra.mxu0 0.0
    %348 = vmatprep.subr.mxu0 0.0
    %349 = vmatpush1.xpose.msra.mxu0 0.0
    %350 = vmatprep.subr.mxu0 0.0
    %351 = vmatpush1.xpose.msra.mxu0 0.0
    %352 = vmatprep.subr.mxu0 0.0
    %353 = vmatpush1.xpose.msra.mxu0 0.0
    %354 = vmatprep.subr.mxu0 0.0
    %355 = vmatpush1.xpose.msra.mxu0 0.0
    %356 = vmatprep.subr.mxu0 0.0
    %357 = vmatpush1.xpose.msra.mxu0 0.0
    %358 = vmatprep.subr.mxu0 0.0
    %359 = vmatpush1.xpose.msra.mxu0 0.0
    %360 = vmatprep.subr.mxu0 0.0
    %361 = vmatpush1.xpose.msra.mxu0 0.0
    %362 = vmatprep.subr.mxu0 0.0
    %363 = vmatpush1.xpose.msra.mxu0 0.0
    %364 = vmatprep.subr.mxu0 0.0
    %365 = vmatpush1.xpose.msra.mxu0 0.0
    %366 = vmatprep.subr.mxu0 0.0
    %367 = vmatpush1.xpose.msra.mxu0 0.0
    %368 = vmatprep.subr.mxu0 0.0
    %369 = vmatpush1.xpose.msra.mxu0 0.0
    %370 = vmatprep.subr.mxu0 0.0
    %371 = vmatpush1.xpose.msra.mxu0 0.0
    %372 = vmatprep.mubr.f32.mxu0 0.0
    %373 = vmatmul.mubr.f32.gmra.mrb[0].mxu0 %v261
    %v374 = vpop.f32.mrb[0].mxu0
    %v375 = vadd.f32 0.0, %v374
    %v376 = vpop.f32.mrb[0].mxu0
    %377 = vmatprep.mubr.f32.mxu0 0.0
    %378 = vmatmul.mubr.f32.gmra.mrb[0].mxu0 %v264
    %v379 = vpop.f32.mrb[0].mxu0
    %v380 = vadd.f32 0.0, %v379
    %v381 = vpop.f32.mrb[0].mxu0
    %382 = vmatprep.mubr.f32.mxu0 0.0
    %383 = vmatmul.mubr.f32.gmra.mrb[0].mxu0 %v267
    %v384 = vpop.f32.mrb[0].mxu0
    %v385 = vadd.f32 0.0, %v384
    %v386 = vpop.f32.mrb[0].mxu0
    %387 = vmatprep.mubr.f32.mxu0 0.0
    %388 = vmatmul.mubr.f32.gmra.mrb[0].mxu0 %v270
    %v389 = vpop.f32.mrb[0].mxu0
    %v390 = vadd.f32 0.0, %v389
    %v391 = vpop.f32.mrb[0].mxu0
    %392 = vmatprep.mubr.f32.mxu0 0.0
    %393 = vmatmul.mubr.f32.gmra.mrb[0].mxu0 %v273
    %v394 = vpop.f32.mrb[0].mxu0
    %v395 = vadd.f32 0.0, %v394
    %v396 = vpop.f32.mrb[0].mxu0
    %397 = vmatprep.mubr.f32.mxu0 0.0
    %398 = vmatmul.mubr.f32.gmra.mrb[0].mxu0 %v276
    %v399 = vpop.f32.mrb[0].mxu0
    %v400 = vadd.f32 0.0, %v399
    %v401 = vpop.f32.mrb[0].mxu0
    %402 = vmatprep.mubr.f32.mxu0 0.0
    %403 = vmatmul.mubr.f32.gmra.mrb[0].mxu0 %v279
    %v404 = vpop.f32.mrb[0].mxu0
    %v405 = vadd.f32 0.0, %v404
    %v406 = vpop.f32.mrb[0].mxu0
    %407 = vmatprep.mubr.f32.mxu0 0.0
    %408 = vmatmul.mubr.f32.gmra.mrb[0].mxu0 %v282
    %v409 = vpop.f32.mrb[0].mxu0
    %v410 = vadd.f32 0.0, %v409
    %v411 = vpop.f32.mrb[0].mxu0
    %412 = vmatprep.mubr.f32.mxu0 0.0
    %413 = vmatmul.mubr.f32.gmra.mrb[0].mxu0 %v285
    %v414 = vpop.f32.mrb[0].mxu0
    %v415 = vadd.f32 0.0, %v414
    %v416 = vpop.f32.mrb[0].mxu0
    %417 = vmatprep.mubr.f32.mxu0 0.0
    %418 = vmatmul.mubr.f32.gmra.mrb[0].mxu0 %v288
    %v419 = vpop.f32.mrb[0].mxu0
    %v420 = vadd.f32 0.0, %v419
    %v421 = vpop.f32.mrb[0].mxu0
    %422 = vmatprep.mubr.f32.mxu0 0.0
    %423 = vmatmul.mubr.f32.gmra.mrb[0].mxu0 %v291
    %v424 = vpop.f32.mrb[0].mxu0
    %v425 = vadd.f32 0.0, %v424
    %v426 = vpop.f32.mrb[0].mxu0
    %427 = vmatprep.mubr.f32.mxu0 0.0
    %428 = vmatmul.mubr.f32.gmra.mrb[0].mxu0 %v294
    %v429 = vpop.f32.mrb[0].mxu0
    %v430 = vadd.f32 0.0, %v429
    %v431 = vpop.f32.mrb[0].mxu0
    %432 = vmatprep.mubr.f32.mxu0 0.0
    %433 = vmatmul.mubr.f32.gmra.mrb[0].mxu0 %v297
    %v434 = vpop.f32.mrb[0].mxu0
    %v435 = vadd.f32 0.0, %v434
    %v436 = vpop.f32.mrb[0].mxu0
    %437 = vmatprep.mubr.f32.mxu0 0.0
    %438 = vmatmul.mubr.f32.gmra.mrb[0].mxu0 %v300
    %v439 = vpop.f32.mrb[0].mxu0
    %v440 = vadd.f32 0.0, %v439
    %v441 = vpop.f32.mrb[0].mxu0
    %442 = vmatprep.mubr.f32.mxu0 0.0
    %443 = vmatmul.mubr.f32.gmra.mrb[0].mxu0 %v303
    %v444 = vpop.f32.mrb[0].mxu0
    %v445 = vadd.f32 0.0, %v444
    %v446 = vpop.f32.mrb[0].mxu0
    %447 = vmatprep.mubr.f32.mxu0 0.0
    %448 = vmatmul.mubr.f32.gmra.mrb[0].mxu0 %v306
    %v449 = vpop.f32.mrb[0].mxu0
    %v450 = vadd.f32 0.0, %v449
    %v451 = vpop.f32.mrb[0].mxu0
    %452 = vdwg.mxu0
    %453 = vmax.xlane.f32.xlu0 %v375
    %v454 = vpop.xlane.xlu0 %453
    %455 = vmax.xlane.f32.xlu0 %v380
    %v456 = vpop.xlane.xlu0 %455
    %457 = vmax.xlane.f32.xlu0 %v385
    %v458 = vpop.xlane.xlu0 %457
    %459 = vmax.xlane.f32.xlu0 %v390
    %v460 = vpop.xlane.xlu0 %459
    %461 = vmax.xlane.f32.xlu0 %v395
    %v462 = vpop.xlane.xlu0 %461
    %463 = vmax.xlane.f32.xlu0 %v400
    %v464 = vpop.xlane.xlu0 %463
    %465 = vmax.xlane.f32.xlu0 %v405
    %v466 = vpop.xlane.xlu0 %465
    %467 = vmax.xlane.f32.xlu0 %v410
    %v468 = vpop.xlane.xlu0 %467
    %469 = vmax.xlane.f32.xlu0 %v415
    %v470 = vpop.xlane.xlu0 %469
    %471 = vmax.xlane.f32.xlu0 %v420
    %v472 = vpop.xlane.xlu0 %471
    %473 = vmax.xlane.f32.xlu0 %v425
    %v474 = vpop.xlane.xlu0 %473
    %475 = vmax.xlane.f32.xlu0 %v430
    %v476 = vpop.xlane.xlu0 %475
    %477 = vmax.xlane.f32.xlu0 %v435
    %v478 = vpop.xlane.xlu0 %477
    %479 = vmax.xlane.f32.xlu0 %v440
    %v480 = vpop.xlane.xlu0 %479
    %481 = vmax.xlane.f32.xlu0 %v445
    %v482 = vpop.xlane.xlu0 %481
    %483 = vmax.xlane.f32.xlu0 %v450
    %v484 = vpop.xlane.xlu0 %483
    %v485 = vsub.f32 %v375, %v454
    %v486 = vsub.f32 %v380, %v456
    %v487 = vsub.f32 %v385, %v458
    %v488 = vsub.f32 %v390, %v460
    %v489 = vsub.f32 %v395, %v462
    %v490 = vsub.f32 %v400, %v464
    %v491 = vsub.f32 %v405, %v466
    %v492 = vsub.f32 %v410, %v468
    %v493 = vsub.f32 %v415, %v470
    %v494 = vsub.f32 %v420, %v472
    %v495 = vsub.f32 %v425, %v474
    %v496 = vsub.f32 %v430, %v476
    %v497 = vsub.f32 %v435, %v478
    %v498 = vsub.f32 %v440, %v480
    %v499 = vsub.f32 %v445, %v482
    %v500 = vsub.f32 %v450, %v484
    %v501 = vmul.f32 %v485, 1.442695
    %v502 = vpow.pop %v501
    %v503 = vmul.f32 %v486, 1.442695
    %v504 = vpow.pop %v503
    %v505 = vmul.f32 %v487, 1.442695
    %v506 = vpow.pop %v505
    %v507 = vmul.f32 %v488, 1.442695
    %v508 = vpow.pop %v507
    %v509 = vmul.f32 %v489, 1.442695
    %v510 = vpow.pop %v509
    %v511 = vmul.f32 %v490, 1.442695
    %v512 = vpow.pop %v511
    %v513 = vmul.f32 %v491, 1.442695
    %v514 = vpow.pop %v513
    %v515 = vmul.f32 %v492, 1.442695
    %v516 = vpow.pop %v515
    %v517 = vmul.f32 %v493, 1.442695
    %v518 = vpow.pop %v517
    %v519 = vmul.f32 %v494, 1.442695
    %v520 = vpow.pop %v519
    %v521 = vmul.f32 %v495, 1.442695
    %v522 = vpow.pop %v521
    %v523 = vmul.f32 %v496, 1.442695
    %v524 = vpow.pop %v523
    %v525 = vmul.f32 %v497, 1.442695
    %v526 = vpow.pop %v525
    %v527 = vmul.f32 %v498, 1.442695
    %v528 = vpow.pop %v527
    %v529 = vmul.f32 %v499, 1.442695
    %v530 = vpow.pop %v529
    %v531 = vmul.f32 %v500, 1.442695
    %v532 = vpow.pop %v531
    %533 = vadd.xlane.f32.xlu0 %v502
    %v534 = vpop.xlane.xlu0 %533
    %535 = vadd.xlane.f32.xlu0 %v504
    %v536 = vpop.xlane.xlu0 %535
    %537 = vadd.xlane.f32.xlu0 %v506
    %v538 = vpop.xlane.xlu0 %537
    %539 = vadd.xlane.f32.xlu0 %v508
    %v540 = vpop.xlane.xlu0 %539
    %541 = vadd.xlane.f32.xlu0 %v510
    %v542 = vpop.xlane.xlu0 %541
    %543 = vadd.xlane.f32.xlu0 %v512
    %v544 = vpop.xlane.xlu0 %543
    %545 = vadd.xlane.f32.xlu0 %v514
    %v546 = vpop.xlane.xlu0 %545
    %547 = vadd.xlane.f32.xlu0 %v516
    %v548 = vpop.xlane.xlu0 %547
    %549 = vadd.xlane.f32.xlu0 %v518
    %v550 = vpop.xlane.xlu0 %549
    %551 = vadd.xlane.f32.xlu0 %v520
    %v552 = vpop.xlane.xlu0 %551
    %553 = vadd.xlane.f32.xlu0 %v522
    %v554 = vpop.xlane.xlu0 %553
    %555 = vadd.xlane.f32.xlu0 %v524
    %v556 = vpop.xlane.xlu0 %555
    %557 = vadd.xlane.f32.xlu0 %v526
    %v558 = vpop.xlane.xlu0 %557
    %559 = vadd.xlane.f32.xlu0 %v528
    %v560 = vpop.xlane.xlu0 %559
    %561 = vadd.xlane.f32.xlu0 %v530
    %v562 = vpop.xlane.xlu0 %561
    %563 = vadd.xlane.f32.xlu0 %v532
    %v564 = vpop.xlane.xlu0 %563
    %565 = vmatprep.subr.mxu0 0.0
    %566 = vmatpush1.msra.mxu0 %v166
    %567 = vmatprep.subr.mxu0 0.0
    %568 = vmatpush1.msra.mxu0 %v171
    %569 = vmatprep.subr.mxu0 0.0
    %570 = vmatpush1.msra.mxu0 %v176
    %571 = vmatprep.subr.mxu0 0.0
    %572 = vmatpush1.msra.mxu0 %v181
    %573 = vmatprep.subr.mxu0 0.0
    %574 = vmatpush1.msra.mxu0 %v186
    %575 = vmatprep.subr.mxu0 0.0
    %576 = vmatpush1.msra.mxu0 %v191
    %577 = vmatprep.subr.mxu0 0.0
    %578 = vmatpush1.msra.mxu0 %v196
    %579 = vmatprep.subr.mxu0 0.0
    %580 = vmatpush1.msra.mxu0 %v201
    %581 = vmatprep.subr.mxu0 0.0
    %582 = vmatpush1.msra.mxu0 %v206
    %583 = vmatprep.subr.mxu0 0.0
    %584 = vmatpush1.msra.mxu0 %v211
    %585 = vmatprep.subr.mxu0 0.0
    %586 = vmatpush1.msra.mxu0 %v216
    %587 = vmatprep.subr.mxu0 0.0
    %588 = vmatpush1.msra.mxu0 %v221
    %589 = vmatprep.subr.mxu0 0.0
    %590 = vmatpush1.msra.mxu0 %v226
    %591 = vmatprep.subr.mxu0 0.0
    %592 = vmatpush1.msra.mxu0 %v231
    %593 = vmatprep.subr.mxu0 0.0
    %594 = vmatpush1.msra.mxu0 %v236
    %595 = vmatprep.subr.mxu0 0.0
    %596 = vmatpush1.msra.mxu0 %v241
    %597 = vmatprep.subr.mxu0 0.0
    %598 = vmatpush1.msra.mxu0 0.0
    %599 = vmatprep.subr.mxu0 0.0
    %600 = vmatpush1.msra.mxu0 0.0
    %601 = vmatprep.subr.mxu0 0.0
    %602 = vmatpush1.msra.mxu0 0.0
    %603 = vmatprep.subr.mxu0 0.0
    %604 = vmatpush1.msra.mxu0 0.0
    %605 = vmatprep.subr.mxu0 0.0
    %606 = vmatpush1.msra.mxu0 0.0
    %607 = vmatprep.subr.mxu0 0.0
    %608 = vmatpush1.msra.mxu0 0.0
    %609 = vmatprep.subr.mxu0 0.0
    %610 = vmatpush1.msra.mxu0 0.0
    %611 = vmatprep.subr.mxu0 0.0
    %612 = vmatpush1.msra.mxu0 0.0
    %613 = vmatprep.subr.mxu0 0.0
    %614 = vmatpush1.msra.mxu0 0.0
    %615 = vmatprep.subr.mxu0 0.0
    %616 = vmatpush1.msra.mxu0 0.0
    %617 = vmatprep.subr.mxu0 0.0
    %618 = vmatpush1.msra.mxu0 0.0
    %619 = vmatprep.subr.mxu0 0.0
    %620 = vmatpush1.msra.mxu0 0.0
    %621 = vmatprep.subr.mxu0 0.0
    %622 = vmatpush1.msra.mxu0 0.0
    %623 = vmatprep.subr.mxu0 0.0
    %624 = vmatpush1.msra.mxu0 0.0
    %625 = vmatprep.subr.mxu0 0.0
    %626 = vmatpush1.msra.mxu0 0.0
    %627 = vmatprep.subr.mxu0 0.0
    %628 = vmatpush1.msra.mxu0 0.0
    %629 = vmatprep.mubr.f32.mxu0 0.0
    %630 = vmatmul.mubr.f32.gmra.mrb[0].mxu0 %v502
    %v631 = vpop.f32.mrb[0].mxu0
    %v632 = vadd.f32 0.0, %v631
    %v633 = vpop.f32.mrb[0].mxu0
    %634 = vmatprep.mubr.f32.mxu0 0.0
    %635 = vmatmul.mubr.f32.gmra.mrb[0].mxu0 %v504
    %v636 = vpop.f32.mrb[0].mxu0
    %v637 = vadd.f32 0.0, %v636
    %v638 = vpop.f32.mrb[0].mxu0
    %639 = vmatprep.mubr.f32.mxu0 0.0
    %640 = vmatmul.mubr.f32.gmra.mrb[0].mxu0 %v506
    %v641 = vpop.f32.mrb[0].mxu0
    %v642 = vadd.f32 0.0, %v641
    %v643 = vpop.f32.mrb[0].mxu0
    %644 = vmatprep.mubr.f32.mxu0 0.0
    %645 = vmatmul.mubr.f32.gmra.mrb[0].mxu0 %v508
    %v646 = vpop.f32.mrb[0].mxu0
    %v647 = vadd.f32 0.0, %v646
    %v648 = vpop.f32.mrb[0].mxu0
    %649 = vmatprep.mubr.f32.mxu0 0.0
    %650 = vmatmul.mubr.f32.gmra.mrb[0].mxu0 %v510
    %v651 = vpop.f32.mrb[0].mxu0
    %v652 = vadd.f32 0.0, %v651
    %v653 = vpop.f32.mrb[0].mxu0
    %654 = vmatprep.mubr.f32.mxu0 0.0
    %655 = vmatmul.mubr.f32.gmra.mrb[0].mxu0 %v512
    %v656 = vpop.f32.mrb[0].mxu0
    %v657 = vadd.f32 0.0, %v656
    %v658 = vpop.f32.mrb[0].mxu0
    %659 = vmatprep.mubr.f32.mxu0 0.0
    %660 = vmatmul.mubr.f32.gmra.mrb[0].mxu0 %v514
    %v661 = vpop.f32.mrb[0].mxu0
    %v662 = vadd.f32 0.0, %v661
    %v663 = vpop.f32.mrb[0].mxu0
    %664 = vmatprep.mubr.f32.mxu0 0.0
    %665 = vmatmul.mubr.f32.gmra.mrb[0].mxu0 %v516
    %v666 = vpop.f32.mrb[0].mxu0
    %v667 = vadd.f32 0.0, %v666
    %v668 = vpop.f32.mrb[0].mxu0
    %669 = vmatprep.mubr.f32.mxu0 0.0
    %670 = vmatmul.mubr.f32.gmra.mrb[0].mxu0 %v518
    %v671 = vpop.f32.mrb[0].mxu0
    %v672 = vadd.f32 0.0, %v671
    %v673 = vpop.f32.mrb[0].mxu0
    %674 = vmatprep.mubr.f32.mxu0 0.0
    %675 = vmatmul.mubr.f32.gmra.mrb[0].mxu0 %v520
    %v676 = vpop.f32.mrb[0].mxu0
    %v677 = vadd.f32 0.0, %v676
    %v678 = vpop.f32.mrb[0].mxu0
    %679 = vmatprep.mubr.f32.mxu0 0.0
    %680 = vmatmul.mubr.f32.gmra.mrb[0].mxu0 %v522
    %v681 = vpop.f32.mrb[0].mxu0
    %v682 = vadd.f32 0.0, %v681
    %v683 = vpop.f32.mrb[0].mxu0
    %684 = vmatprep.mubr.f32.mxu0 0.0
    %685 = vmatmul.mubr.f32.gmra.mrb[0].mxu0 %v524
    %v686 = vpop.f32.mrb[0].mxu0
    %v687 = vadd.f32 0.0, %v686
    %v688 = vpop.f32.mrb[0].mxu0
    %689 = vmatprep.mubr.f32.mxu0 0.0
    %690 = vmatmul.mubr.f32.gmra.mrb[0].mxu0 %v526
    %v691 = vpop.f32.mrb[0].mxu0
    %v692 = vadd.f32 0.0, %v691
    %v693 = vpop.f32.mrb[0].mxu0
    %694 = vmatprep.mubr.f32.mxu0 0.0
    %695 = vmatmul.mubr.f32.gmra.mrb[0].mxu0 %v528
    %v696 = vpop.f32.mrb[0].mxu0
    %v697 = vadd.f32 0.0, %v696
    %v698 = vpop.f32.mrb[0].mxu0
    %699 = vmatprep.mubr.f32.mxu0 0.0
    %700 = vmatmul.mubr.f32.gmra.mrb[0].mxu0 %v530
    %v701 = vpop.f32.mrb[0].mxu0
    %v702 = vadd.f32 0.0, %v701
    %v703 = vpop.f32.mrb[0].mxu0
    %704 = vmatprep.mubr.f32.mxu0 0.0
    %705 = vmatmul.mubr.f32.gmra.mrb[0].mxu0 %v532
    %v706 = vpop.f32.mrb[0].mxu0
    %v707 = vadd.f32 0.0, %v706
    %v708 = vpop.f32.mrb[0].mxu0
    %709 = vdwg.mxu0
    %v710 = vrcp.pop %v534
    %v711 = vrcp.pop %v536
    %v712 = vrcp.pop %v538
    %v713 = vrcp.pop %v540
    %v714 = vrcp.pop %v542
    %v715 = vrcp.pop %v544
    %v716 = vrcp.pop %v546
    %v717 = vrcp.pop %v548
    %v718 = vrcp.pop %v550
    %v719 = vrcp.pop %v552
    %v720 = vrcp.pop %v554
    %v721 = vrcp.pop %v556
    %v722 = vrcp.pop %v558
    %v723 = vrcp.pop %v560
    %v724 = vrcp.pop %v562
    %v725 = vrcp.pop %v564
    %v726 = vmul.f32 %v632, %v710
    %v727 = vmul.f32 %v637, %v711
    %v728 = vmul.f32 %v642, %v712
    %v729 = vmul.f32 %v647, %v713
    %v730 = vmul.f32 %v652, %v714
    %v731 = vmul.f32 %v657, %v715
    %v732 = vmul.f32 %v662, %v716
    %v733 = vmul.f32 %v667, %v717
    %v734 = vmul.f32 %v672, %v718
    %v735 = vmul.f32 %v677, %v719
    %v736 = vmul.f32 %v682, %v720
    %v737 = vmul.f32 %v687, %v721
    %v738 = vmul.f32 %v692, %v722
    %v739 = vmul.f32 %v697, %v723
    %v740 = vmul.f32 %v702, %v724
    %v741 = vmul.f32 %v707, %v725
    %v742 = vld [vmem:[%s2] sm:$0x1]
    %v744 = vlaneseq
    %v745 = vshrl.u32 %v744, 7
    %v746 = vsub.s32 0, %v745
    %v747 = vrot.slane %v742, %v746
    %v749 = vadd.f32 %v726, %v747
    %v750 = vadd.f32 %v727, %v747
    %v751 = vadd.f32 %v728, %v747
    %v752 = vadd.f32 %v729, %v747
    %v753 = vadd.f32 %v730, %v747
    %v754 = vadd.f32 %v731, %v747
    %v755 = vadd.f32 %v732, %v747
    %v756 = vadd.f32 %v733, %v747
    %v757 = vadd.f32 %v734, %v747
    %v758 = vadd.f32 %v735, %v747
    %v759 = vadd.f32 %v736, %v747
    %v760 = vadd.f32 %v737, %v747
    %v761 = vadd.f32 %v738, %v747
    %v762 = vadd.f32 %v739, %v747
    %v763 = vadd.f32 %v740, %v747
    %v764 = vadd.f32 %v741, %v747
    %v765 = vmax.f32 %v749, 0.0
    %v766 = vmax.f32 %v750, 0.0
    %v767 = vmax.f32 %v751, 0.0
    %v768 = vmax.f32 %v752, 0.0
    %v769 = vmax.f32 %v753, 0.0
    %v770 = vmax.f32 %v754, 0.0
    %v771 = vmax.f32 %v755, 0.0
    %v772 = vmax.f32 %v756, 0.0
    %v773 = vmax.f32 %v757, 0.0
    %v774 = vmax.f32 %v758, 0.0
    %v775 = vmax.f32 %v759, 0.0
    %v776 = vmax.f32 %v760, 0.0
    %v777 = vmax.f32 %v761, 0.0
    %v778 = vmax.f32 %v762, 0.0
    %v779 = vmax.f32 %v763, 0.0
    %v780 = vmax.f32 %v764, 0.0
    %v781 = vld [vmem:[%s3] sm:$0xff]
    %v782 = vld [vmem:[%s3 + $0x8] sm:$0xff]
    %v783 = vld [vmem:[%s4] sm:$0x1]
    %v785 = vlaneseq
    %v786 = vshrl.u32 %v785, 7
    %v787 = vsub.s32 0, %v786
    %v788 = vrot.slane %v783, %v787
    %vm790 = vcmask 130048
    %v792 = vsel %vm790, %v765, 0
    %v795 = vsel %vm790, %v766, 0
    %v798 = vsel %vm790, %v767, 0
    %v801 = vsel %vm790, %v768, 0
    %v804 = vsel %vm790, %v769, 0
    %v807 = vsel %vm790, %v770, 0
    %v810 = vsel %vm790, %v771, 0
    %v813 = vsel %vm790, %v772, 0
    %v816 = vsel %vm790, %v773, 0
    %v819 = vsel %vm790, %v774, 0
    %v822 = vsel %vm790, %v775, 0
    %v825 = vsel %vm790, %v776, 0
    %v828 = vsel %vm790, %v777, 0
    %v831 = vsel %vm790, %v778, 0
    %v834 = vsel %vm790, %v779, 0
    %v837 = vsel %vm790, %v780, 0
    %839 = vmatprep.subr.mxu0 0.0
    %840 = vmatpush1.msra.mxu0 %v781
    %841 = vmatprep.subr.mxu0 0.0
    %842 = vmatpush1.msra.mxu0 %v782
    %843 = vmatprep.subr.mxu0 0.0
    %844 = vmatpush1.msra.mxu0 0.0
    %845 = vmatprep.subr.mxu0 0.0
    %846 = vmatpush1.msra.mxu0 0.0
    %847 = vmatprep.subr.mxu0 0.0
    %848 = vmatpush1.msra.mxu0 0.0
    %849 = vmatprep.subr.mxu0 0.0
    %850 = vmatpush1.msra.mxu0 0.0
    %851 = vmatprep.subr.mxu0 0.0
    %852 = vmatpush1.msra.mxu0 0.0
    %853 = vmatprep.subr.mxu0 0.0
    %854 = vmatpush1.msra.mxu0 0.0
    %855 = vmatprep.subr.mxu0 0.0
    %856 = vmatpush1.msra.mxu0 0.0
    %857 = vmatprep.subr.mxu0 0.0
    %858 = vmatpush1.msra.mxu0 0.0
    %859 = vmatprep.subr.mxu0 0.0
    %860 = vmatpush1.msra.mxu0 0.0
    %861 = vmatprep.subr.mxu0 0.0
    %862 = vmatpush1.msra.mxu0 0.0
    %863 = vmatprep.subr.mxu0 0.0
    %864 = vmatpush1.msra.mxu0 0.0
    %865 = vmatprep.subr.mxu0 0.0
    %866 = vmatpush1.msra.mxu0 0.0
    %867 = vmatprep.subr.mxu0 0.0
    %868 = vmatpush1.msra.mxu0 0.0
    %869 = vmatprep.subr.mxu0 0.0
    %870 = vmatpush1.msra.mxu0 0.0
    %871 = vmatprep.subr.mxu0 0.0
    %872 = vmatpush1.msra.mxu0 0.0
    %873 = vmatprep.subr.mxu0 0.0
    %874 = vmatpush1.msra.mxu0 0.0
    %875 = vmatprep.subr.mxu0 0.0
    %876 = vmatpush1.msra.mxu0 0.0
    %877 = vmatprep.subr.mxu0 0.0
    %878 = vmatpush1.msra.mxu0 0.0
    %879 = vmatprep.subr.mxu0 0.0
    %880 = vmatpush1.msra.mxu0 0.0
    %881 = vmatprep.subr.mxu0 0.0
    %882 = vmatpush1.msra.mxu0 0.0
    %883 = vmatprep.subr.mxu0 0.0
    %884 = vmatpush1.msra.mxu0 0.0
    %885 = vmatprep.subr.mxu0 0.0
    %886 = vmatpush1.msra.mxu0 0.0
    %887 = vmatprep.subr.mxu0 0.0
    %888 = vmatpush1.msra.mxu0 0.0
    %889 = vmatprep.subr.mxu0 0.0
    %890 = vmatpush1.msra.mxu0 0.0
    %891 = vmatprep.subr.mxu0 0.0
    %892 = vmatpush1.msra.mxu0 0.0
    %893 = vmatprep.subr.mxu0 0.0
    %894 = vmatpush1.msra.mxu0 0.0
    %895 = vmatprep.subr.mxu0 0.0
    %896 = vmatpush1.msra.mxu0 0.0
    %897 = vmatprep.subr.mxu0 0.0
    %898 = vmatpush1.msra.mxu0 0.0
    %899 = vmatprep.subr.mxu0 0.0
    %900 = vmatpush1.msra.mxu0 0.0
    %901 = vmatprep.subr.mxu0 0.0
    %902 = vmatpush1.msra.mxu0 0.0
    %903 = vmatprep.mubr.f32.mxu0 0.0
    %904 = vmatmul.mubr.f32.gmra.mrb[0].mxu0 %v792
    %v905 = vpop.f32.mrb[0].mxu0
    %v906 = vadd.f32 %v788, %v905
    %v907 = vpop.f32.mrb[0].mxu0
    %908 = vmatprep.mubr.f32.mxu0 0.0
    %909 = vmatmul.mubr.f32.gmra.mrb[0].mxu0 %v795
    %v910 = vpop.f32.mrb[0].mxu0
    %v911 = vadd.f32 %v788, %v910
    %v912 = vpop.f32.mrb[0].mxu0
    %913 = vmatprep.mubr.f32.mxu0 0.0
    %914 = vmatmul.mubr.f32.gmra.mrb[0].mxu0 %v798
    %v915 = vpop.f32.mrb[0].mxu0
    %v916 = vadd.f32 %v788, %v915
    %v917 = vpop.f32.mrb[0].mxu0
    %918 = vmatprep.mubr.f32.mxu0 0.0
    %919 = vmatmul.mubr.f32.gmra.mrb[0].mxu0 %v801
    %v920 = vpop.f32.mrb[0].mxu0
    %v921 = vadd.f32 %v788, %v920
    %v922 = vpop.f32.mrb[0].mxu0
    %923 = vmatprep.mubr.f32.mxu0 0.0
    %924 = vmatmul.mubr.f32.gmra.mrb[0].mxu0 %v804
    %v925 = vpop.f32.mrb[0].mxu0
    %v926 = vadd.f32 %v788, %v925
    %v927 = vpop.f32.mrb[0].mxu0
    %928 = vmatprep.mubr.f32.mxu0 0.0
    %929 = vmatmul.mubr.f32.gmra.mrb[0].mxu0 %v807
    %v930 = vpop.f32.mrb[0].mxu0
    %v931 = vadd.f32 %v788, %v930
    %v932 = vpop.f32.mrb[0].mxu0
    %933 = vmatprep.mubr.f32.mxu0 0.0
    %934 = vmatmul.mubr.f32.gmra.mrb[0].mxu0 %v810
    %v935 = vpop.f32.mrb[0].mxu0
    %v936 = vadd.f32 %v788, %v935
    %v937 = vpop.f32.mrb[0].mxu0
    %938 = vmatprep.mubr.f32.mxu0 0.0
    %939 = vmatmul.mubr.f32.gmra.mrb[0].mxu0 %v813
    %v940 = vpop.f32.mrb[0].mxu0
    %v941 = vadd.f32 %v788, %v940
    %v942 = vpop.f32.mrb[0].mxu0
    %943 = vmatprep.mubr.f32.mxu0 0.0
    %944 = vmatmul.mubr.f32.gmra.mrb[0].mxu0 %v816
    %v945 = vpop.f32.mrb[0].mxu0
    %v946 = vadd.f32 %v788, %v945
    %v947 = vpop.f32.mrb[0].mxu0
    %948 = vmatprep.mubr.f32.mxu0 0.0
    %949 = vmatmul.mubr.f32.gmra.mrb[0].mxu0 %v819
    %v950 = vpop.f32.mrb[0].mxu0
    %v951 = vadd.f32 %v788, %v950
    %v952 = vpop.f32.mrb[0].mxu0
    %953 = vmatprep.mubr.f32.mxu0 0.0
    %954 = vmatmul.mubr.f32.gmra.mrb[0].mxu0 %v822
    %v955 = vpop.f32.mrb[0].mxu0
    %v956 = vadd.f32 %v788, %v955
    %v957 = vpop.f32.mrb[0].mxu0
    %958 = vmatprep.mubr.f32.mxu0 0.0
    %959 = vmatmul.mubr.f32.gmra.mrb[0].mxu0 %v825
    %v960 = vpop.f32.mrb[0].mxu0
    %v961 = vadd.f32 %v788, %v960
    %v962 = vpop.f32.mrb[0].mxu0
    %963 = vmatprep.mubr.f32.mxu0 0.0
    %964 = vmatmul.mubr.f32.gmra.mrb[0].mxu0 %v828
    %v965 = vpop.f32.mrb[0].mxu0
    %v966 = vadd.f32 %v788, %v965
    %v967 = vpop.f32.mrb[0].mxu0
    %968 = vmatprep.mubr.f32.mxu0 0.0
    %969 = vmatmul.mubr.f32.gmra.mrb[0].mxu0 %v831
    %v970 = vpop.f32.mrb[0].mxu0
    %v971 = vadd.f32 %v788, %v970
    %v972 = vpop.f32.mrb[0].mxu0
    %973 = vmatprep.mubr.f32.mxu0 0.0
    %974 = vmatmul.mubr.f32.gmra.mrb[0].mxu0 %v834
    %v975 = vpop.f32.mrb[0].mxu0
    %v976 = vadd.f32 %v788, %v975
    %v977 = vpop.f32.mrb[0].mxu0
    %978 = vmatprep.mubr.f32.mxu0 0.0
    %979 = vmatmul.mubr.f32.gmra.mrb[0].mxu0 %v837
    %v980 = vpop.f32.mrb[0].mxu0
    %v981 = vadd.f32 %v788, %v980
    %v982 = vpop.f32.mrb[0].mxu0
    %983 = vdwg.mxu0
    %v984 = vmax.f32 %v906, 0.0
    %v985 = vmax.f32 %v911, 0.0
    %v986 = vmax.f32 %v916, 0.0
    %v987 = vmax.f32 %v921, 0.0
    %v988 = vmax.f32 %v926, 0.0
    %v989 = vmax.f32 %v931, 0.0
    %v990 = vmax.f32 %v936, 0.0
    %v991 = vmax.f32 %v941, 0.0
    %v992 = vmax.f32 %v946, 0.0
    %v993 = vmax.f32 %v951, 0.0
    %v994 = vmax.f32 %v956, 0.0
    %v995 = vmax.f32 %v961, 0.0
    %v996 = vmax.f32 %v966, 0.0
    %v997 = vmax.f32 %v971, 0.0
    %v998 = vmax.f32 %v976, 0.0
    %v999 = vmax.f32 %v981, 0.0
    %v1000 = vld [vmem:[%s5] sm:$0xff]
    %v1001 = vld [vmem:[%s5 + $0x8] sm:$0xff]
    %v1002 = vld [vmem:[#allocation2] sm:$0x1]
    %1004 = vset.pattern.permute.xlu0 0
    %1005 = vperm.xlu0 %1004, %v1002
    %v1006 = vpop.permute.xlu0 %1005
    %v1008 = vlaneseq
    %v1009 = vshrl.u32 %v1008, 7
    %v1010 = vsub.s32 0, %v1009
    %v1011 = vrot.slane %v1006, %v1010
    %1012 = vxpose.xlu0.b32.start [1/16] %v1000, 128
    %1013 = vxpose.xlu0.b32.cont [2/16] %v1001, 128
    %1014 = vxpose.xlu0.b32.cont [3/16] 0.0, 128
    %1015 = vxpose.xlu0.b32.cont [4/16] 0.0, 128
    %1016 = vxpose.xlu0.b32.cont [5/16] 0.0, 128
    %1017 = vxpose.xlu0.b32.cont [6/16] 0.0, 128
    %1018 = vxpose.xlu0.b32.cont [7/16] 0.0, 128
    %1019 = vxpose.xlu0.b32.cont [8/16] 0.0, 128
    %1020 = vxpose.xlu0.b32.cont [9/16] 0.0, 128
    %1021 = vxpose.xlu0.b32.cont [10/16] 0.0, 128
    %1022 = vxpose.xlu0.b32.cont [11/16] 0.0, 128
    %1023 = vxpose.xlu0.b32.cont [12/16] 0.0, 128
    %1024 = vxpose.xlu0.b32.cont [13/16] 0.0, 128
    %1025 = vxpose.xlu0.b32.cont [14/16] 0.0, 128
    %1026 = vxpose.xlu0.b32.cont [15/16] 0.0, 128
    %1027 = vxpose.xlu0.b32.end [16/16] 0.0, 128
    %v1028 = vpop.trf.xlu0
    %v1029 = vpop.trf.xlu0
    %v1030 = vpop.trf.xlu0
    %v1031 = vpop.trf.xlu0
    %v1032 = vpop.trf.xlu0
    %v1033 = vpop.trf.xlu0
    %v1034 = vpop.trf.xlu0
    %v1035 = vpop.trf.xlu0
    %v1036 = vpop.trf.xlu0
    %v1037 = vpop.trf.xlu0
    %v1038 = vpop.trf.xlu0
    %v1039 = vpop.trf.xlu0
    %v1040 = vpop.trf.xlu0
    %v1041 = vpop.trf.xlu0
    %v1042 = vpop.trf.xlu0
    %v1043 = vpop.trf.xlu0
    %v1045 = vsel %vm790, %v1028, 0
    %v1048 = vsel %vm790, %v984, 0
    %v1051 = vsel %vm790, %v985, 0
    %v1054 = vsel %vm790, %v986, 0
    %v1057 = vsel %vm790, %v987, 0
    %v1060 = vsel %vm790, %v988, 0
    %v1063 = vsel %vm790, %v989, 0
    %v1066 = vsel %vm790, %v990, 0
    %v1069 = vsel %vm790, %v991, 0
    %v1072 = vsel %vm790, %v992, 0
    %v1075 = vsel %vm790, %v993, 0
    %v1078 = vsel %vm790, %v994, 0
    %v1081 = vsel %vm790, %v995, 0
    %v1084 = vsel %vm790, %v996, 0
    %v1087 = vsel %vm790, %v997, 0
    %v1090 = vsel %vm790, %v998, 0
    %v1093 = vsel %vm790, %v999, 0
    %1095 = vmatprep.subr.mxu0 0.0
    %1096 = vmatpush1.xpose.msra.mxu0 %v1048
    %1097 = vmatprep.subr.mxu0 0.0
    %1098 = vmatpush1.xpose.msra.mxu0 %v1051
    %1099 = vmatprep.subr.mxu0 0.0
    %1100 = vmatpush1.xpose.msra.mxu0 %v1054
    %1101 = vmatprep.subr.mxu0 0.0
    %1102 = vmatpush1.xpose.msra.mxu0 %v1057
    %1103 = vmatprep.subr.mxu0 0.0
    %1104 = vmatpush1.xpose.msra.mxu0 %v1060
    %1105 = vmatprep.subr.mxu0 0.0
    %1106 = vmatpush1.xpose.msra.mxu0 %v1063
    %1107 = vmatprep.subr.mxu0 0.0
    %1108 = vmatpush1.xpose.msra.mxu0 %v1066
    %1109 = vmatprep.subr.mxu0 0.0
    %1110 = vmatpush1.xpose.msra.mxu0 %v1069
    %1111 = vmatprep.subr.mxu0 0.0
    %1112 = vmatpush1.xpose.msra.mxu0 %v1072
    %1113 = vmatprep.subr.mxu0 0.0
    %1114 = vmatpush1.xpose.msra.mxu0 %v1075
    %1115 = vmatprep.subr.mxu0 0.0
    %1116 = vmatpush1.xpose.msra.mxu0 %v1078
    %1117 = vmatprep.subr.mxu0 0.0
    %1118 = vmatpush1.xpose.msra.mxu0 %v1081
    %1119 = vmatprep.subr.mxu0 0.0
    %1120 = vmatpush1.xpose.msra.mxu0 %v1084
    %1121 = vmatprep.subr.mxu0 0.0
    %1122 = vmatpush1.xpose.msra.mxu0 %v1087
    %1123 = vmatprep.subr.mxu0 0.0
    %1124 = vmatpush1.xpose.msra.mxu0 %v1090
    %1125 = vmatprep.subr.mxu0 0.0
    %1126 = vmatpush1.xpose.msra.mxu0 %v1093
    %1127 = vmatprep.subr.mxu0 0.0
    %1128 = vmatpush1.xpose.msra.mxu0 0.0
    %1129 = vmatprep.subr.mxu0 0.0
    %1130 = vmatpush1.xpose.msra.mxu0 0.0
    %1131 = vmatprep.subr.mxu0 0.0
    %1132 = vmatpush1.xpose.msra.mxu0 0.0
    %1133 = vmatprep.subr.mxu0 0.0
    %1134 = vmatpush1.xpose.msra.mxu0 0.0
    %1135 = vmatprep.subr.mxu0 0.0
    %1136 = vmatpush1.xpose.msra.mxu0 0.0
    %1137 = vmatprep.subr.mxu0 0.0
    %1138 = vmatpush1.xpose.msra.mxu0 0.0
    %1139 = vmatprep.subr.mxu0 0.0
    %1140 = vmatpush1.xpose.msra.mxu0 0.0
    %1141 = vmatprep.subr.mxu0 0.0
    %1142 = vmatpush1.xpose.msra.mxu0 0.0
    %1143 = vmatprep.subr.mxu0 0.0
    %1144 = vmatpush1.xpose.msra.mxu0 0.0
    %1145 = vmatprep.subr.mxu0 0.0
    %1146 = vmatpush1.xpose.msra.mxu0 0.0
    %1147 = vmatprep.subr.mxu0 0.0
    %1148 = vmatpush1.xpose.msra.mxu0 0.0
    %1149 = vmatprep.subr.mxu0 0.0
    %1150 = vmatpush1.xpose.msra.mxu0 0.0
    %1151 = vmatprep.subr.mxu0 0.0
    %1152 = vmatpush1.xpose.msra.mxu0 0.0
    %1153 = vmatprep.subr.mxu0 0.0
    %1154 = vmatpush1.xpose.msra.mxu0 0.0
    %1155 = vmatprep.subr.mxu0 0.0
    %1156 = vmatpush1.xpose.msra.mxu0 0.0
    %1157 = vmatprep.subr.mxu0 0.0
    %1158 = vmatpush1.xpose.msra.mxu0 0.0
    %1159 = vmatprep.mubr.f32.mxu0 0.0
    %1160 = vmatmul.mubr.f32.gmra.mrb[0].mxu0 %v1045
    %v1161 = vpop.f32.mrb[0].mxu0
    %v1162 = vadd.f32 %v1011, %v1161
    %v1163 = vpop.f32.mrb[0].mxu0
    %1164 = vdwg.mxu0
    %v1165 = vmax.f32 %v1162, 0.0
    %1166 = vst [vmem:[#allocation3] sm:$0x1] %v1165
    // Predicated region
    $region30: #{tpu_custom_call.1} parent=1 // pred_check
      _
    $region31: #{tpu_custom_call.1} parent=1 // pred_check_branch
      %1168 = sbr.rel (0) target = $region33
    $region32: #{tpu_custom_call.1} parent=1 // pred_region
      %s1170 = ssub.s32 16, 16
      %1171 = vsyncadd [#allocation4], %s1170
      %s1173 = sshll.u32 [#allocation3], 4
      %s1174 = int_to_ptr.vmem [resolvable:$true] %s1173
      %1176 = dma.vmem_to_hbm [thread:$0]  %s1174, 16, %s7, [#allocation4]
    $region33: #{tpu_custom_call.1} parent=1 // pred_fallthru
      _
    // Predicated region
    $region34: #{tpu_custom_call.1} parent=1 // pred_check
      _
    $region35: #{tpu_custom_call.1} parent=1 // pred_check_branch
      %1178 = sbr.rel (0) target = $region37
    $region36: #{tpu_custom_call.1} parent=1 // pred_region
      %1179 = dma.done [#allocation4], 16
    $region37: #{tpu_custom_call.1} parent=1 // pred_fallthru
      _
    %1180 = vsyncpa [#allocation4], 1

</llo_original>
